<compile_context>
chip_gen: v7x
topology: tpu7x:2x2x1
jax: 0.10.0
libtpu: 0.0.40
codegen_flags: <defaults>
</compile_context>

<pallas_src>
import math
import jax
import jax.numpy as jnp
from jax.experimental import pallas as pl
from jax.experimental.pallas import tpu as pltpu

_EPS = 1e-5


def _make_kernel(num_layers, eps):
    L = num_layers

    def kernel(x_ref, *refs):
        # refs order: W0..W_{L-1}, b0..b_{L-1}, g0..g_{L-2}, beta0..beta_{L-2}, out
        out_ref = refs[-1]
        w_refs = refs[0:L]
        b_refs = refs[L:2 * L]
        g_refs = refs[2 * L:3 * L - 1]
        be_refs = refs[3 * L - 1:4 * L - 2]

        h = x_ref[...].astype(jnp.float32)                       # (B, I)
        for i in range(L):
            # One lane-dense matmul covering all K MLPs at once (MXU, f32 acc).
            h = jnp.dot(h, w_refs[i][...],
                        preferred_element_type=jnp.float32) + b_refs[i][...]
            if i < L - 1:
                # BatchNorm1d over the packed K*H features: training-mode batch
                # statistics, biased variance, eps inside the rsqrt (PyTorch).
                mean = jnp.mean(h, axis=0, keepdims=True)        # (1, K*H)
                centered = h - mean                              # reused below
                var = jnp.mean(centered * centered, axis=0, keepdims=True)
                # Fold gamma into the inverse std on the (1, K*H) row so the
                # full-width path is a single mul + add.
                scale = g_refs[i][...] * jax.lax.rsqrt(var + eps)
                h = centered * scale + be_refs[i][...]
                h = jnp.maximum(h, 0.0)                          # ReLU
                # TODO(synk): stochastic training-mode dropout mask not emitted;
                # eval semantics (identity) used for determinism.  Running BN
                # stats are not updated (does not affect the training forward).
        out_ref[...] = h.astype(out_ref.dtype)

    return kernel


def parallel_mlp_forward(x, weights, biases, gammas, betas, eps=_EPS):
    """x: (B, input_size). weights[i]: (K, d_i, d_{i+1}). Returns (B, K, output_size)."""
    B, _ = x.shape
    L = len(weights)
    K = weights[0].shape[0]
    O = weights[-1].shape[2]

    # ---- pack parameters into lane-dense 2D operands (tiny, done once) ----
    packed_w = []
    for i, w in enumerate(weights):
        k, di, do = w.shape
        w = w.astype(jnp.float32)
        if i == 0:
            # (K, I, H0) -> (I, K*H0): out[b, k*H0+h] = sum_i x[b,i] * W0[k,i,h]
            packed_w.append(jnp.transpose(w, (1, 0, 2)).reshape(di, k * do))
        else:
            # Block-diagonal (K*Di, K*Do): one fused matmul over all K MLPs.
            eye = jnp.eye(k, dtype=w.dtype)
            bd = jnp.einsum('kio,kl->kilo', w, eye).reshape(k * di, k * do)
            packed_w.append(bd)
    packed_b = [b.reshape(1, -1).astype(jnp.float32) for b in biases]
    packed_g = [g.reshape(1, -1).astype(jnp.float32) for g in gammas]
    packed_be = [b.reshape(1, -1).astype(jnp.float32) for b in betas]

    inputs = [x] + packed_w + packed_b + packed_g + packed_be
    vmem = pltpu.MemorySpace.VMEM
    in_specs = [pl.BlockSpec(memory_space=vmem) for _ in inputs]

    out_flat = pl.pallas_call(
        _make_kernel(L, eps),
        out_shape=jax.ShapeDtypeStruct((B, K * O), jnp.float32),
        in_specs=in_specs,
        out_specs=pl.BlockSpec(memory_space=vmem),
    )(*inputs)
    # lane-packed (B, K*O) -> (B, K, O): pure row-major reshape, no transpose.
    return out_flat.reshape(B, K, O)


def reference_forward(x, weights, biases, gammas, betas, eps=_EPS):
    """Pure-JAX reference mirroring the PyTorch forward (same deterministic path)."""
    L = len(weights)
    h = x
    for i in range(L):
        if i == 0:
            h = jnp.einsum('bi,kih->bkh', h, weights[0])
        else:
            h = jnp.einsum('bki,kih->bkh', h, weights[i])
        h = h + biases[i][None]
        if i < L - 1:
            mean = jnp.mean(h, axis=0, keepdims=True)
            var = jnp.mean((h - mean) ** 2, axis=0, keepdims=True)
            h = (h - mean) / jnp.sqrt(var + eps)
            h = h * gammas[i][None] + betas[i][None]
            h = jax.nn.relu(h)
    return h


def init_params(key, num_mlps, input_size, hidden_sizes, output_size):
    """Deterministic init matching ParallelMLP.reset_parameters (xavier-uniform-like)."""
    layer_sizes = [input_size] + list(hidden_sizes) + [output_size]
    num_layers = len(layer_sizes) - 1
    weights, biases, gammas, betas = [], [], [], []
    keys = jax.random.split(key, num_layers)
    for i in range(num_layers):
        fan_in, fan_out = layer_sizes[i], layer_sizes[i + 1]
        std = math.sqrt(2.0 / float(fan_in + fan_out))
        a = math.sqrt(3.0) * std
        w = jax.random.uniform(
            keys[i], (num_mlps, fan_in, fan_out), jnp.float32, minval=-a, maxval=a)
        weights.append(w)
        biases.append(jnp.zeros((num_mlps, fan_out), jnp.float32))
        if i < num_layers - 1:
            gammas.append(jnp.ones((num_mlps, fan_out), jnp.float32))   # BN weight
            betas.append(jnp.zeros((num_mlps, fan_out), jnp.float32))   # BN bias
    return weights, biases, gammas, betas


if __name__ == "__main__":
    # Small shapes consistent with the module: B=8, K=4 parallel MLPs,
    # input 32 -> hidden [32, 32] -> output 16.  Packed operands are lane-dense:
    # (8,32)@(32,128) -> BN/ReLU on (8,128) -> (8,128)@(128,128) -> (8,128)@(128,64).
    B, K = 8, 4
    input_size, hidden_sizes, output_size = 32, [32, 32], 16

    key = jax.random.PRNGKey(0)
    k_x, k_p = jax.random.split(key)
    x = jax.random.normal(k_x, (B, input_size), jnp.float32)
    weights, biases, gammas, betas = init_params(
        k_p, K, input_size, hidden_sizes, output_size)

    fwd = jax.jit(parallel_mlp_forward, static_argnames=('eps',))
    out = fwd(x, weights, biases, gammas, betas)
    out = jax.block_until_ready(out)

    ref = reference_forward(x, weights, biases, gammas, betas)
    assert out.shape == (B, K, output_size), out.shape
    assert jnp.allclose(out, ref, atol=1e-4, rtol=1e-4), float(jnp.max(jnp.abs(out - ref)))

    print("KERNEL_OK")
</pallas_src>

<mosaic_0001>
module attributes {stable_mosaic.version = 11 : i64} {
  func.func @kernel(%arg0: memref<8x32xf32, #tpu.memory_space<vmem>>, %arg1: memref<32x128xf32, #tpu.memory_space<vmem>>, %arg2: memref<128x128xf32, #tpu.memory_space<vmem>>, %arg3: memref<128x64xf32, #tpu.memory_space<vmem>>, %arg4: memref<1x128xf32, #tpu.memory_space<vmem>>, %arg5: memref<1x128xf32, #tpu.memory_space<vmem>>, %arg6: memref<1x64xf32, #tpu.memory_space<vmem>>, %arg7: memref<1x128xf32, #tpu.memory_space<vmem>>, %arg8: memref<1x128xf32, #tpu.memory_space<vmem>>, %arg9: memref<1x128xf32, #tpu.memory_space<vmem>>, %arg10: memref<1x128xf32, #tpu.memory_space<vmem>>, %arg11: memref<8x64xf32, #tpu.memory_space<vmem>>) attributes {dimension_semantics = [], scalar_prefetch = 0 : i64, scratch_operands = 0 : i64, tpu.core_type = #tpu.core_type<tc>} {
    %c0 = arith.constant 0 : index
    %c0_0 = arith.constant 0 : index
    %0 = vector.load %arg0[%c0, %c0_0] : memref<8x32xf32, #tpu.memory_space<vmem>>, vector<8x32xf32>
    %c0_1 = arith.constant 0 : index
    %c0_2 = arith.constant 0 : index
    %1 = vector.load %arg1[%c0_1, %c0_2] : memref<32x128xf32, #tpu.memory_space<vmem>>, vector<32x128xf32>
    %cst = arith.constant dense<0.000000e+00> : vector<8x128xf32>
    %2 = tpu.matmul %0, %1, %cst {dimension_numbers = #tpu.dot_dimension_numbers<[1], [0], [0], [1], [0, 0, 1, 1], [], []>} : vector<8x32xf32>, vector<32x128xf32>, vector<8x128xf32> -> vector<8x128xf32>
    %c0_3 = arith.constant 0 : index
    %c0_4 = arith.constant 0 : index
    %3 = vector.load %arg4[%c0_3, %c0_4] : memref<1x128xf32, #tpu.memory_space<vmem>>, vector<1x128xf32>
    %4 = vector.broadcast %3 : vector<1x128xf32> to vector<8x128xf32>
    %5 = arith.addf %2, %4 : vector<8x128xf32>
    %cst_5 = arith.constant dense<0.000000e+00> : vector<128xf32>
    %6 = vector.multi_reduction <add>, %5, %cst_5 [0] : vector<8x128xf32> to vector<128xf32>
    %7 = vector.shape_cast %6 : vector<128xf32> to vector<1x128xf32>
    %cst_6 = arith.constant 8.000000e+00 : f32
    %8 = vector.broadcast %cst_6 : f32 to vector<1x128xf32>
    %9 = arith.divf %7, %8 : vector<1x128xf32>
    %10 = vector.broadcast %9 : vector<1x128xf32> to vector<8x128xf32>
    %11 = arith.subf %5, %10 : vector<8x128xf32>
    %12 = arith.mulf %11, %11 : vector<8x128xf32>
    %cst_7 = arith.constant dense<0.000000e+00> : vector<128xf32>
    %13 = vector.multi_reduction <add>, %12, %cst_7 [0] : vector<8x128xf32> to vector<128xf32>
    %14 = vector.shape_cast %13 : vector<128xf32> to vector<1x128xf32>
    %cst_8 = arith.constant 8.000000e+00 : f32
    %15 = vector.broadcast %cst_8 : f32 to vector<1x128xf32>
    %16 = arith.divf %14, %15 : vector<1x128xf32>
    %c0_9 = arith.constant 0 : index
    %c0_10 = arith.constant 0 : index
    %17 = vector.load %arg7[%c0_9, %c0_10] : memref<1x128xf32, #tpu.memory_space<vmem>>, vector<1x128xf32>
    %cst_11 = arith.constant 9.99999974E-6 : f32
    %18 = vector.broadcast %cst_11 : f32 to vector<1x128xf32>
    %19 = arith.addf %16, %18 : vector<1x128xf32>
    %20 = math.rsqrt %19 : vector<1x128xf32>
    %21 = arith.mulf %17, %20 : vector<1x128xf32>
    %22 = vector.broadcast %21 : vector<1x128xf32> to vector<8x128xf32>
    %23 = arith.mulf %11, %22 : vector<8x128xf32>
    %c0_12 = arith.constant 0 : index
    %c0_13 = arith.constant 0 : index
    %24 = vector.load %arg9[%c0_12, %c0_13] : memref<1x128xf32, #tpu.memory_space<vmem>>, vector<1x128xf32>
    %25 = vector.broadcast %24 : vector<1x128xf32> to vector<8x128xf32>
    %26 = arith.addf %23, %25 : vector<8x128xf32>
    %cst_14 = arith.constant 0.000000e+00 : f32
    %27 = vector.broadcast %cst_14 : f32 to vector<8x128xf32>
    %28 = arith.maximumf %26, %27 : vector<8x128xf32>
    %c0_15 = arith.constant 0 : index
    %c0_16 = arith.constant 0 : index
    %29 = vector.load %arg2[%c0_15, %c0_16] : memref<128x128xf32, #tpu.memory_space<vmem>>, vector<128x128xf32>
    %cst_17 = arith.constant dense<0.000000e+00> : vector<8x128xf32>
    %30 = tpu.matmul %28, %29, %cst_17 {dimension_numbers = #tpu.dot_dimension_numbers<[1], [0], [0], [1], [0, 0, 1, 1], [], []>} : vector<8x128xf32>, vector<128x128xf32>, vector<8x128xf32> -> vector<8x128xf32>
    %c0_18 = arith.constant 0 : index
    %c0_19 = arith.constant 0 : index
    %31 = vector.load %arg5[%c0_18, %c0_19] : memref<1x128xf32, #tpu.memory_space<vmem>>, vector<1x128xf32>
    %32 = vector.broadcast %31 : vector<1x128xf32> to vector<8x128xf32>
    %33 = arith.addf %30, %32 : vector<8x128xf32>
    %cst_20 = arith.constant dense<0.000000e+00> : vector<128xf32>
    %34 = vector.multi_reduction <add>, %33, %cst_20 [0] : vector<8x128xf32> to vector<128xf32>
    %35 = vector.shape_cast %34 : vector<128xf32> to vector<1x128xf32>
    %cst_21 = arith.constant 8.000000e+00 : f32
    %36 = vector.broadcast %cst_21 : f32 to vector<1x128xf32>
    %37 = arith.divf %35, %36 : vector<1x128xf32>
    %38 = vector.broadcast %37 : vector<1x128xf32> to vector<8x128xf32>
    %39 = arith.subf %33, %38 : vector<8x128xf32>
    %40 = arith.mulf %39, %39 : vector<8x128xf32>
    %cst_22 = arith.constant dense<0.000000e+00> : vector<128xf32>
    %41 = vector.multi_reduction <add>, %40, %cst_22 [0] : vector<8x128xf32> to vector<128xf32>
    %42 = vector.shape_cast %41 : vector<128xf32> to vector<1x128xf32>
    %cst_23 = arith.constant 8.000000e+00 : f32
    %43 = vector.broadcast %cst_23 : f32 to vector<1x128xf32>
    %44 = arith.divf %42, %43 : vector<1x128xf32>
    %c0_24 = arith.constant 0 : index
    %c0_25 = arith.constant 0 : index
    %45 = vector.load %arg8[%c0_24, %c0_25] : memref<1x128xf32, #tpu.memory_space<vmem>>, vector<1x128xf32>
    %cst_26 = arith.constant 9.99999974E-6 : f32
    %46 = vector.broadcast %cst_26 : f32 to vector<1x128xf32>
    %47 = arith.addf %44, %46 : vector<1x128xf32>
    %48 = math.rsqrt %47 : vector<1x128xf32>
    %49 = arith.mulf %45, %48 : vector<1x128xf32>
    %50 = vector.broadcast %49 : vector<1x128xf32> to vector<8x128xf32>
    %51 = arith.mulf %39, %50 : vector<8x128xf32>
    %c0_27 = arith.constant 0 : index
    %c0_28 = arith.constant 0 : index
    %52 = vector.load %arg10[%c0_27, %c0_28] : memref<1x128xf32, #tpu.memory_space<vmem>>, vector<1x128xf32>
    %53 = vector.broadcast %52 : vector<1x128xf32> to vector<8x128xf32>
    %54 = arith.addf %51, %53 : vector<8x128xf32>
    %cst_29 = arith.constant 0.000000e+00 : f32
    %55 = vector.broadcast %cst_29 : f32 to vector<8x128xf32>
    %56 = arith.maximumf %54, %55 : vector<8x128xf32>
    %c0_30 = arith.constant 0 : index
    %c0_31 = arith.constant 0 : index
    %57 = vector.load %arg3[%c0_30, %c0_31] : memref<128x64xf32, #tpu.memory_space<vmem>>, vector<128x64xf32>
    %cst_32 = arith.constant dense<0.000000e+00> : vector<8x64xf32>
    %58 = tpu.matmul %56, %57, %cst_32 {dimension_numbers = #tpu.dot_dimension_numbers<[1], [0], [0], [1], [0, 0, 1, 1], [], []>} : vector<8x128xf32>, vector<128x64xf32>, vector<8x64xf32> -> vector<8x64xf32>
    %c0_33 = arith.constant 0 : index
    %c0_34 = arith.constant 0 : index
    %59 = vector.load %arg6[%c0_33, %c0_34] : memref<1x64xf32, #tpu.memory_space<vmem>>, vector<1x64xf32>
    %60 = vector.broadcast %59 : vector<1x64xf32> to vector<8x64xf32>
    %61 = arith.addf %58, %60 : vector<8x64xf32>
    %c0_35 = arith.constant 0 : index
    %c0_36 = arith.constant 0 : index
    %62 = vector.load %arg11[%c0_35, %c0_36] : memref<8x64xf32, #tpu.memory_space<vmem>>, vector<8x64xf32>
    tpu.vector_store %arg11[%c0_35, %c0_36], %61 {strides = array<i32>} : memref<8x64xf32, #tpu.memory_space<vmem>>, vector<8x64xf32>,
    return
  }
}

</mosaic_0001>

<llo_original>
// kernel: parallel_mlp_forward.1
$region0: #{parallel_mlp_forward.1}
  #allocation0 [shape = 'u32[]', space=smem, size = 0x4, offset = 0x4, fixed_abs, tag = 'smem constant byte address 0x4 - core index']
  #allocation1 [shape = 'u32[144,128]{1,0:T(1,128)}', space=vmem, size = 0x12000, scoped, tag = 'internal scratch']
  %s0 = inlined_call_operand.vmem [shape: f32[8,32], index: 0, kind: input, shape index: {}]
  %s1 = inlined_call_operand.vmem [shape: f32[32,128], index: 1, kind: input, shape index: {}]
  %s2 = inlined_call_operand.vmem [shape: f32[128,128], index: 2, kind: input, shape index: {}]
  %s3 = inlined_call_operand.vmem [shape: f32[128,64], index: 3, kind: input, shape index: {}]
  %s4 = inlined_call_operand.vmem [shape: f32[1,128], index: 4, kind: input, shape index: {}]
  %s5 = inlined_call_operand.vmem [shape: f32[1,128], index: 5, kind: input, shape index: {}]
  %s6 = inlined_call_operand.vmem [shape: f32[1,64], index: 6, kind: input, shape index: {}]
  %s7 = inlined_call_operand.vmem [shape: f32[1,128], index: 7, kind: input, shape index: {}]
  %s8 = inlined_call_operand.vmem [shape: f32[1,128], index: 8, kind: input, shape index: {}]
  %s9 = inlined_call_operand.vmem [shape: f32[1,128], index: 9, kind: input, shape index: {}]
  %s10 = inlined_call_operand.vmem [shape: f32[1,128], index: 10, kind: input, shape index: {}]
  %s11 = inlined_call_operand.vmem [shape: f32[8,64], index: 11, kind: output, shape index: {}]
  %s12 = sld [smem:[#allocation0]]
  $region54: #{parallel_mlp_forward.1} parent=0
    _
  %s14 = ssub.s32 1, %s12
  %s15 = scalar_select 0, %s14, %s12
  // Predicated region
  $region2: #{parallel_mlp_forward.1} parent=0 // pred_check
    _
  $region3: #{parallel_mlp_forward.1} parent=0 // pred_check_branch
    %17 = sbr.rel (0) target = $region5
  $region4: #{parallel_mlp_forward.1} parent=0 // pred_region
    _
  $region5: #{parallel_mlp_forward.1} parent=0 // pred_fallthru
    _
  // Predicated region
  $region6: #{parallel_mlp_forward.1} parent=0 // pred_check
    _
  $region7: #{parallel_mlp_forward.1} parent=0 // pred_check_branch
    %19 = sbr.rel (0) target = $region9
  $region8: #{parallel_mlp_forward.1} parent=0 // pred_region
    _
  $region9: #{parallel_mlp_forward.1} parent=0 // pred_fallthru
    _
  // Predicated region
  $region10: #{parallel_mlp_forward.1} parent=0 // pred_check
    _
  $region11: #{parallel_mlp_forward.1} parent=0 // pred_check_branch
    %21 = sbr.rel (0) target = $region13
  $region12: #{parallel_mlp_forward.1} parent=0 // pred_region
    _
  $region13: #{parallel_mlp_forward.1} parent=0 // pred_fallthru
    _
  // Predicated region
  $region14: #{parallel_mlp_forward.1} parent=0 // pred_check
    _
  $region15: #{parallel_mlp_forward.1} parent=0 // pred_check_branch
    %23 = sbr.rel (0) target = $region17
  $region16: #{parallel_mlp_forward.1} parent=0 // pred_region
    _
  $region17: #{parallel_mlp_forward.1} parent=0 // pred_fallthru
    _
  // Predicated region
  $region18: #{parallel_mlp_forward.1} parent=0 // pred_check
    _
  $region19: #{parallel_mlp_forward.1} parent=0 // pred_check_branch
    %25 = sbr.rel (0) target = $region21
  $region20: #{parallel_mlp_forward.1} parent=0 // pred_region
    _
  $region21: #{parallel_mlp_forward.1} parent=0 // pred_fallthru
    _
  // Predicated region
  $region22: #{parallel_mlp_forward.1} parent=0 // pred_check
    _
  $region23: #{parallel_mlp_forward.1} parent=0 // pred_check_branch
    %27 = sbr.rel (0) target = $region25
  $region24: #{parallel_mlp_forward.1} parent=0 // pred_region
    _
  $region25: #{parallel_mlp_forward.1} parent=0 // pred_fallthru
    _
  // Predicated region
  $region26: #{parallel_mlp_forward.1} parent=0 // pred_check
    _
  $region27: #{parallel_mlp_forward.1} parent=0 // pred_check_branch
    %29 = sbr.rel (0) target = $region29
  $region28: #{parallel_mlp_forward.1} parent=0 // pred_region
    _
  $region29: #{parallel_mlp_forward.1} parent=0 // pred_fallthru
    _
  // Predicated region
  $region30: #{parallel_mlp_forward.1} parent=0 // pred_check
    _
  $region31: #{parallel_mlp_forward.1} parent=0 // pred_check_branch
    %31 = sbr.rel (0) target = $region33
  $region32: #{parallel_mlp_forward.1} parent=0 // pred_region
    _
  $region33: #{parallel_mlp_forward.1} parent=0 // pred_fallthru
    _
  // Predicated region
  $region34: #{parallel_mlp_forward.1} parent=0 // pred_check
    _
  $region35: #{parallel_mlp_forward.1} parent=0 // pred_check_branch
    %33 = sbr.rel (0) target = $region37
  $region36: #{parallel_mlp_forward.1} parent=0 // pred_region
    _
  $region37: #{parallel_mlp_forward.1} parent=0 // pred_fallthru
    _
  // Predicated region
  $region38: #{parallel_mlp_forward.1} parent=0 // pred_check
    _
  $region39: #{parallel_mlp_forward.1} parent=0 // pred_check_branch
    %35 = sbr.rel (0) target = $region41
  $region40: #{parallel_mlp_forward.1} parent=0 // pred_region
    _
  $region41: #{parallel_mlp_forward.1} parent=0 // pred_fallthru
    _
  // Predicated region
  $region42: #{parallel_mlp_forward.1} parent=0 // pred_check
    _
  $region43: #{parallel_mlp_forward.1} parent=0 // pred_check_branch
    %37 = sbr.rel (0) target = $region45
  $region44: #{parallel_mlp_forward.1} parent=0 // pred_region
    _
  $region45: #{parallel_mlp_forward.1} parent=0 // pred_fallthru
    _
  %v38 = vld [vmem:[%s0] sm:$0xff]
  %v39 = vld [vmem:[%s1] sm:$0xff]
  %v40 = vld [vmem:[%s1 + $0x8] sm:$0xff]
  %v41 = vld [vmem:[%s1 + $0x10] sm:$0xff]
  %v42 = vld [vmem:[%s1 + $0x18] sm:$0xff]
  %v43 = vld [vmem:[%s4] sm:$0x1]
  %v45 = vlaneseq
  %v46 = vshrl.u32 %v45, 7
  %v47 = vsub.s32 0, %v46
  %v48 = vrot.slane %v43, %v47
  %vm50 = vcmask 261120
  %v52 = vsel %vm50, %v38, 0
  %54 = vmatprep.subr.mxu0 0.0
  %55 = vmatpush1.msra.mxu0 %v39
  %56 = vmatprep.subr.mxu0 0.0
  %57 = vmatpush1.msra.mxu0 %v40
  %58 = vmatprep.subr.mxu0 0.0
  %59 = vmatpush1.msra.mxu0 %v41
  %60 = vmatprep.subr.mxu0 0.0
  %61 = vmatpush1.msra.mxu0 %v42
  %62 = vmatprep.subr.mxu0 0.0
  %63 = vmatpush1.msra.mxu0 0.0
  %64 = vmatprep.subr.mxu0 0.0
  %65 = vmatpush1.msra.mxu0 0.0
  %66 = vmatprep.subr.mxu0 0.0
  %67 = vmatpush1.msra.mxu0 0.0
  %68 = vmatprep.subr.mxu0 0.0
  %69 = vmatpush1.msra.mxu0 0.0
  %70 = vmatprep.subr.mxu0 0.0
  %71 = vmatpush1.msra.mxu0 0.0
  %72 = vmatprep.subr.mxu0 0.0
  %73 = vmatpush1.msra.mxu0 0.0
  %74 = vmatprep.subr.mxu0 0.0
  %75 = vmatpush1.msra.mxu0 0.0
  %76 = vmatprep.subr.mxu0 0.0
  %77 = vmatpush1.msra.mxu0 0.0
  %78 = vmatprep.subr.mxu0 0.0
  %79 = vmatpush1.msra.mxu0 0.0
  %80 = vmatprep.subr.mxu0 0.0
  %81 = vmatpush1.msra.mxu0 0.0
  %82 = vmatprep.subr.mxu0 0.0
  %83 = vmatpush1.msra.mxu0 0.0
  %84 = vmatprep.subr.mxu0 0.0
  %85 = vmatpush1.msra.mxu0 0.0
  %86 = vmatprep.subr.mxu0 0.0
  %87 = vmatpush1.msra.mxu0 0.0
  %88 = vmatprep.subr.mxu0 0.0
  %89 = vmatpush1.msra.mxu0 0.0
  %90 = vmatprep.subr.mxu0 0.0
  %91 = vmatpush1.msra.mxu0 0.0
  %92 = vmatprep.subr.mxu0 0.0
  %93 = vmatpush1.msra.mxu0 0.0
  %94 = vmatprep.subr.mxu0 0.0
  %95 = vmatpush1.msra.mxu0 0.0
  %96 = vmatprep.subr.mxu0 0.0
  %97 = vmatpush1.msra.mxu0 0.0
  %98 = vmatprep.subr.mxu0 0.0
  %99 = vmatpush1.msra.mxu0 0.0
  %100 = vmatprep.subr.mxu0 0.0
  %101 = vmatpush1.msra.mxu0 0.0
  %102 = vmatprep.subr.mxu0 0.0
  %103 = vmatpush1.msra.mxu0 0.0
  %104 = vmatprep.subr.mxu0 0.0
  %105 = vmatpush1.msra.mxu0 0.0
  %106 = vmatprep.subr.mxu0 0.0
  %107 = vmatpush1.msra.mxu0 0.0
  %108 = vmatprep.subr.mxu0 0.0
  %109 = vmatpush1.msra.mxu0 0.0
  %110 = vmatprep.subr.mxu0 0.0
  %111 = vmatpush1.msra.mxu0 0.0
  %112 = vmatprep.subr.mxu0 0.0
  %113 = vmatpush1.msra.mxu0 0.0
  %114 = vmatprep.subr.mxu0 0.0
  %115 = vmatpush1.msra.mxu0 0.0
  %116 = vmatprep.subr.mxu0 0.0
  %117 = vmatpush1.msra.mxu0 0.0
  %118 = vmatprep.mubr.f32.mxu0 0.0
  %119 = vmatmul.mubr.f32.gmra.mrb[0].mxu0 %v52
  %v120 = vpop.f32.mrb[0].mxu0
  %v121 = vadd.f32 %v48, %v120
  %v122 = vpop.f32.mrb[0].mxu0
  %123 = vdwg.mxu0
  %v124 = vrot.slane %v121, 4
  %v125 = vadd.f32 %v121, %v124
  %v126 = vrot.slane %v125, 2
  %v127 = vadd.f32 %v125, %v126
  %v128 = vrot.slane %v127, 1
  %v129 = vadd.f32 %v127, %v128
  %v130 = vrcp.pop 8.0
  %v131 = vmul.f32 %v129, %v130
  %v132 = vsub.f32 %v121, %v131
  %v133 = vmul.f32 %v132, %v132
  %v134 = vrot.slane %v133, 4
  %v135 = vadd.f32 %v133, %v134
  %v136 = vrot.slane %v135, 2
  %v137 = vadd.f32 %v135, %v136
  %v138 = vrot.slane %v137, 1
  %v139 = vadd.f32 %v137, %v138
  %v140 = vmul.f32 %v139, %v130
  %v141 = vld [vmem:[%s7] sm:$0x1]
  %v142 = vadd.f32 %v140, 1e-05
  %v143 = vrsqrt.pop %v142
  %v144 = vmul.f32 %v141, %v143
  %v146 = vlaneseq
  %v147 = vshrl.u32 %v146, 7
  %v148 = vsub.s32 0, %v147
  %v149 = vrot.slane %v144, %v148
  %v151 = vmul.f32 %v132, %v149
  %v152 = vld [vmem:[%s9] sm:$0x1]
  %v154 = vlaneseq
  %v155 = vshrl.u32 %v154, 7
  %v156 = vsub.s32 0, %v155
  %v157 = vrot.slane %v152, %v156
  %v159 = vadd.f32 %v151, %v157
  %v160 = vmax.f32 %v159, 0.0
  %v161 = vld [vmem:[%s2] sm:$0xff]
  %v162 = vld [vmem:[%s2 + $0x8] sm:$0xff]
  %v163 = vld [vmem:[%s2 + $0x10] sm:$0xff]
  %v164 = vld [vmem:[%s2 + $0x18] sm:$0xff]
  %v165 = vld [vmem:[%s2 + $0x20] sm:$0xff]
  %v166 = vld [vmem:[%s2 + $0x28] sm:$0xff]
  %v167 = vld [vmem:[%s2 + $0x30] sm:$0xff]
  %v168 = vld [vmem:[%s2 + $0x38] sm:$0xff]
  %v169 = vld [vmem:[%s2 + $0x40] sm:$0xff]
  %v170 = vld [vmem:[%s2 + $0x48] sm:$0xff]
  %v171 = vld [vmem:[%s2 + $0x50] sm:$0xff]
  %v172 = vld [vmem:[%s2 + $0x58] sm:$0xff]
  %v173 = vld [vmem:[%s2 + $0x60] sm:$0xff]
  %v174 = vld [vmem:[%s2 + $0x68] sm:$0xff]
  %v175 = vld [vmem:[%s2 + $0x70] sm:$0xff]
  %v176 = vld [vmem:[%s2 + $0x78] sm:$0xff]
  %v177 = vld [vmem:[%s5] sm:$0x1]
  %v179 = vlaneseq
  %v180 = vshrl.u32 %v179, 7
  %v181 = vsub.s32 0, %v180
  %v182 = vrot.slane %v177, %v181
  %184 = vmatprep.subr.mxu0 0.0
  %185 = vmatpush1.msra.mxu0 %v161
  %186 = vmatprep.subr.mxu0 0.0
  %187 = vmatpush1.msra.mxu0 %v162
  %188 = vmatprep.subr.mxu0 0.0
  %189 = vmatpush1.msra.mxu0 %v163
  %190 = vmatprep.subr.mxu0 0.0
  %191 = vmatpush1.msra.mxu0 %v164
  %192 = vmatprep.subr.mxu0 0.0
  %193 = vmatpush1.msra.mxu0 %v165
  %194 = vmatprep.subr.mxu0 0.0
  %195 = vmatpush1.msra.mxu0 %v166
  %196 = vmatprep.subr.mxu0 0.0
  %197 = vmatpush1.msra.mxu0 %v167
  %198 = vmatprep.subr.mxu0 0.0
  %199 = vmatpush1.msra.mxu0 %v168
  %200 = vmatprep.subr.mxu0 0.0
  %201 = vmatpush1.msra.mxu0 %v169
  %202 = vmatprep.subr.mxu0 0.0
  %203 = vmatpush1.msra.mxu0 %v170
  %204 = vmatprep.subr.mxu0 0.0
  %205 = vmatpush1.msra.mxu0 %v171
  %206 = vmatprep.subr.mxu0 0.0
  %207 = vmatpush1.msra.mxu0 %v172
  %208 = vmatprep.subr.mxu0 0.0
  %209 = vmatpush1.msra.mxu0 %v173
  %210 = vmatprep.subr.mxu0 0.0
  %211 = vmatpush1.msra.mxu0 %v174
  %212 = vmatprep.subr.mxu0 0.0
  %213 = vmatpush1.msra.mxu0 %v175
  %214 = vmatprep.subr.mxu0 0.0
  %215 = vmatpush1.msra.mxu0 %v176
  %216 = vmatprep.subr.mxu0 0.0
  %217 = vmatpush1.msra.mxu0 0.0
  %218 = vmatprep.subr.mxu0 0.0
  %219 = vmatpush1.msra.mxu0 0.0
  %220 = vmatprep.subr.mxu0 0.0
  %221 = vmatpush1.msra.mxu0 0.0
  %222 = vmatprep.subr.mxu0 0.0
  %223 = vmatpush1.msra.mxu0 0.0
  %224 = vmatprep.subr.mxu0 0.0
  %225 = vmatpush1.msra.mxu0 0.0
  %226 = vmatprep.subr.mxu0 0.0
  %227 = vmatpush1.msra.mxu0 0.0
  %228 = vmatprep.subr.mxu0 0.0
  %229 = vmatpush1.msra.mxu0 0.0
  %230 = vmatprep.subr.mxu0 0.0
  %231 = vmatpush1.msra.mxu0 0.0
  %232 = vmatprep.subr.mxu0 0.0
  %233 = vmatpush1.msra.mxu0 0.0
  %234 = vmatprep.subr.mxu0 0.0
  %235 = vmatpush1.msra.mxu0 0.0
  %236 = vmatprep.subr.mxu0 0.0
  %237 = vmatpush1.msra.mxu0 0.0
  %238 = vmatprep.subr.mxu0 0.0
  %239 = vmatpush1.msra.mxu0 0.0
  %240 = vmatprep.subr.mxu0 0.0
  %241 = vmatpush1.msra.mxu0 0.0
  %242 = vmatprep.subr.mxu0 0.0
  %243 = vmatpush1.msra.mxu0 0.0
  %244 = vmatprep.subr.mxu0 0.0
  %245 = vmatpush1.msra.mxu0 0.0
  %246 = vmatprep.subr.mxu0 0.0
  %247 = vmatpush1.msra.mxu0 0.0
  %248 = vmatprep.mubr.f32.mxu0 0.0
  %249 = vmatmul.mubr.f32.gmra.mrb[0].mxu0 %v160
  %v250 = vpop.f32.mrb[0].mxu0
  %v251 = vadd.f32 %v182, %v250
  %v252 = vpop.f32.mrb[0].mxu0
  %253 = vdwg.mxu0
  %v254 = vrot.slane %v251, 4
  %v255 = vadd.f32 %v251, %v254
  %v256 = vrot.slane %v255, 2
  %v257 = vadd.f32 %v255, %v256
  %v258 = vrot.slane %v257, 1
  %v259 = vadd.f32 %v257, %v258
  %v260 = vmul.f32 %v259, %v130
  %v261 = vsub.f32 %v251, %v260
  %v262 = vmul.f32 %v261, %v261
  %v263 = vrot.slane %v262, 4
  %v264 = vadd.f32 %v262, %v263
  %v265 = vrot.slane %v264, 2
  %v266 = vadd.f32 %v264, %v265
  %v267 = vrot.slane %v266, 1
  %v268 = vadd.f32 %v266, %v267
  %v269 = vmul.f32 %v268, %v130
  %v270 = vld [vmem:[%s8] sm:$0x1]
  %v271 = vadd.f32 %v269, 1e-05
  %v272 = vrsqrt.pop %v271
  %v273 = vmul.f32 %v270, %v272
  %v275 = vlaneseq
  %v276 = vshrl.u32 %v275, 7
  %v277 = vsub.s32 0, %v276
  %v278 = vrot.slane %v273, %v277
  %v280 = vmul.f32 %v261, %v278
  %v281 = vld [vmem:[%s10] sm:$0x1]
  %v283 = vlaneseq
  %v284 = vshrl.u32 %v283, 7
  %v285 = vsub.s32 0, %v284
  %v286 = vrot.slane %v281, %v285
  %v288 = vadd.f32 %v280, %v286
  %v289 = vmax.f32 %v288, 0.0
  %v290 = vld [vmem:[%s3] sm:$0xff]
  %v291 = vld [vmem:[%s3 + $0x8] sm:$0xff]
  %v292 = vld [vmem:[%s3 + $0x10] sm:$0xff]
  %v293 = vld [vmem:[%s3 + $0x18] sm:$0xff]
  %v294 = vld [vmem:[%s3 + $0x20] sm:$0xff]
  %v295 = vld [vmem:[%s3 + $0x28] sm:$0xff]
  %v296 = vld [vmem:[%s3 + $0x30] sm:$0xff]
  %v297 = vld [vmem:[%s3 + $0x38] sm:$0xff]
  %v298 = vld [vmem:[%s3 + $0x40] sm:$0xff]
  %v299 = vld [vmem:[%s3 + $0x48] sm:$0xff]
  %v300 = vld [vmem:[%s3 + $0x50] sm:$0xff]
  %v301 = vld [vmem:[%s3 + $0x58] sm:$0xff]
  %v302 = vld [vmem:[%s3 + $0x60] sm:$0xff]
  %v303 = vld [vmem:[%s3 + $0x68] sm:$0xff]
  %v304 = vld [vmem:[%s3 + $0x70] sm:$0xff]
  %v305 = vld [vmem:[%s3 + $0x78] sm:$0xff]
  %v306 = vld [vmem:[%s6] sm:$0x1]
  %v308 = vlaneseq
  %v309 = vshrl.u32 %v308, 7
  %v310 = vsub.s32 0, %v309
  %v311 = vrot.slane %v306, %v310
  %313 = vmatprep.subr.mxu0 0.0
  %314 = vmatpush1.msra.mxu0 %v290
  %315 = vmatprep.subr.mxu0 0.0
  %316 = vmatpush1.msra.mxu0 %v291
  %317 = vmatprep.subr.mxu0 0.0
  %318 = vmatpush1.msra.mxu0 %v292
  %319 = vmatprep.subr.mxu0 0.0
  %320 = vmatpush1.msra.mxu0 %v293
  %321 = vmatprep.subr.mxu0 0.0
  %322 = vmatpush1.msra.mxu0 %v294
  %323 = vmatprep.subr.mxu0 0.0
  %324 = vmatpush1.msra.mxu0 %v295
  %325 = vmatprep.subr.mxu0 0.0
  %326 = vmatpush1.msra.mxu0 %v296
  %327 = vmatprep.subr.mxu0 0.0
  %328 = vmatpush1.msra.mxu0 %v297
  %329 = vmatprep.subr.mxu0 0.0
  %330 = vmatpush1.msra.mxu0 %v298
  %331 = vmatprep.subr.mxu0 0.0
  %332 = vmatpush1.msra.mxu0 %v299
  %333 = vmatprep.subr.mxu0 0.0
  %334 = vmatpush1.msra.mxu0 %v300
  %335 = vmatprep.subr.mxu0 0.0
  %336 = vmatpush1.msra.mxu0 %v301
  %337 = vmatprep.subr.mxu0 0.0
  %338 = vmatpush1.msra.mxu0 %v302
  %339 = vmatprep.subr.mxu0 0.0
  %340 = vmatpush1.msra.mxu0 %v303
  %341 = vmatprep.subr.mxu0 0.0
  %342 = vmatpush1.msra.mxu0 %v304
  %343 = vmatprep.subr.mxu0 0.0
  %344 = vmatpush1.msra.mxu0 %v305
  %345 = vmatprep.subr.mxu0 0.0
  %346 = vmatpush1.msra.mxu0 0.0
  %347 = vmatprep.subr.mxu0 0.0
  %348 = vmatpush1.msra.mxu0 0.0
  %349 = vmatprep.subr.mxu0 0.0
  %350 = vmatpush1.msra.mxu0 0.0
  %351 = vmatprep.subr.mxu0 0.0
  %352 = vmatpush1.msra.mxu0 0.0
  %353 = vmatprep.subr.mxu0 0.0
  %354 = vmatpush1.msra.mxu0 0.0
  %355 = vmatprep.subr.mxu0 0.0
  %356 = vmatpush1.msra.mxu0 0.0
  %357 = vmatprep.subr.mxu0 0.0
  %358 = vmatpush1.msra.mxu0 0.0
  %359 = vmatprep.subr.mxu0 0.0
  %360 = vmatpush1.msra.mxu0 0.0
  %361 = vmatprep.subr.mxu0 0.0
  %362 = vmatpush1.msra.mxu0 0.0
  %363 = vmatprep.subr.mxu0 0.0
  %364 = vmatpush1.msra.mxu0 0.0
  %365 = vmatprep.subr.mxu0 0.0
  %366 = vmatpush1.msra.mxu0 0.0
  %367 = vmatprep.subr.mxu0 0.0
  %368 = vmatpush1.msra.mxu0 0.0
  %369 = vmatprep.subr.mxu0 0.0
  %370 = vmatpush1.msra.mxu0 0.0
  %371 = vmatprep.subr.mxu0 0.0
  %372 = vmatpush1.msra.mxu0 0.0
  %373 = vmatprep.subr.mxu0 0.0
  %374 = vmatpush1.msra.mxu0 0.0
  %375 = vmatprep.subr.mxu0 0.0
  %376 = vmatpush1.msra.mxu0 0.0
  %377 = vmatprep.mubr.f32.mxu0 0.0
  %378 = vmatmul.mubr.f32.gmra.mrb[0].mxu0 %v289
  %v379 = vpop.f32.mrb[0].mxu0
  %v380 = vadd.f32 %v311, %v379
  %v381 = vpop.f32.mrb[0].mxu0
  %382 = vdwg.mxu0
  %vm383 = vcmask 523264
  %384 = vst.msk [vmem:[%s11] sm:$0xff] %vm383, %v380
  // Predicated region
  $region46: #{parallel_mlp_forward.1} parent=0 // pred_check
    _
  $region47: #{parallel_mlp_forward.1} parent=0 // pred_check_branch
    %386 = sbr.rel (0) target = $region49
  $region48: #{parallel_mlp_forward.1} parent=0 // pred_region
    _
  $region49: #{parallel_mlp_forward.1} parent=0 // pred_fallthru
    _
  // Predicated region
  $region50: #{parallel_mlp_forward.1} parent=0 // pred_check
    _
  $region51: #{parallel_mlp_forward.1} parent=0 // pred_check_branch
    %388 = sbr.rel (0) target = $region53
  $region52: #{parallel_mlp_forward.1} parent=0 // pred_region
    _
  $region53: #{parallel_mlp_forward.1} parent=0 // pred_fallthru
    _

</llo_original>
